<compile_context>
chip_gen: v7x
topology: tpu7x:2x2x1
jax: 0.10.0
libtpu: 0.0.40
codegen_flags: <defaults>
</compile_context>

<pallas_src>
import functools

import jax
import jax.numpy as jnp
from jax.experimental import pallas as pl
from jax.experimental.pallas import tpu as pltpu


def _round_up(x: int, m: int) -> int:
    return (x + m - 1) // m * m


# generation: (block_m default, block_i default, fallback physical VMEM bytes)
_GEN_DEFAULTS = {
    "v7x": (384, 256, 64 << 20),
    "v6e": (512, 512, 128 << 20),
    "v5p": (512, 512, 128 << 20),
    "v5e": (320, 512, 128 << 20),
    "unknown": (384, 512, 128 << 20),
}


@functools.lru_cache(maxsize=1)
def _tpu_generation() -> str:
    try:
        kind = jax.devices()[0].device_kind.lower()
    except Exception:
        return "unknown"
    if "v7" in kind or "7x" in kind:
        return "v7x"
    if "v6" in kind:
        return "v6e"
    if "v5p" in kind:
        return "v5p"
    if "v5" in kind:
        return "v5e"
    return "unknown"


@functools.lru_cache(maxsize=1)
def _vmem_capacity_bytes() -> int:
    fallback = _GEN_DEFAULTS[_tpu_generation()][2]
    try:
        cap = int(getattr(pltpu.get_tpu_info(), "vmem_capacity_bytes", 0) or 0)
        if cap > 0:
            return cap
    except Exception:
        pass
    return fallback


def _vmem_estimate(tm, H, block_i, wsz, osz, x_bufs, bias_bufs):
    """Live-VMEM bytes for one grid step, incl. f32 intermediates + scratch margin."""
    return (x_bufs * tm * H * wsz             # x tiles
            + 2 * H * 2 * block_i * wsz        # gate|up weight tiles (double-buffered)
            + 2 * block_i * H * wsz            # down-proj weight tiles
            + 2 * tm * H * osz                 # output tiles
            + tm * H * 4                       # f32 accumulator scratch
            + bias_bufs * H * 4                # bias
            + tm * 2 * block_i * 4             # gu (f32 matmul result)
            + tm * block_i * 4                 # h  (f32)
            + tm * block_i * wsz               # h cast to weight dtype
            + (2 << 20))                       # Mosaic internal scratch margin


def _mlp_kernel(x_ref, wgu_ref, wd_ref, b_ref, o_ref, acc_ref, *, block_i):
    # x_ref:   (tm, H)          activation tile
    # wgu_ref: (H, 2*block_i)   [gate_tile | up_tile] for I-block j (leading dim squeezed)
    # wd_ref:  (block_i, H)     down-projection rows for I-block j
    # b_ref:   (1, H) f32       down-projection bias
    # o_ref:   (tm, H)          output tile (resident across the j axis)
    # acc_ref: (tm, H) f32      VMEM accumulator
    j = pl.program_id(1)

    @pl.when(j == 0)
    def _():
        # Seed the accumulator with the bias: removes the epilogue add.
        acc_ref[...] = jnp.broadcast_to(b_ref[...], acc_ref.shape)

    # Fused gate+up projection: one MXU matmul per (token tile, I tile).
    gu = jnp.dot(x_ref[...], wgu_ref[...], preferred_element_type=jnp.float32)
    gate = gu[:, :block_i]
    up = gu[:, block_i:]

    # SiluAndMul epilogue in f32 (VPU/EUP).
    h = (gate * jax.nn.sigmoid(gate)) * up

    acc_ref[...] += jnp.dot(h.astype(wd_ref.dtype), wd_ref[...],
                            preferred_element_type=jnp.float32)

    @pl.when(j == pl.num_programs(1) - 1)
    def _():
        o_ref[...] = acc_ref[...].astype(o_ref.dtype)


def prepare_telechat2_mlp_weights(w_gate_up, w_down, b_down, *,
                                  block_i=None, dtype=None):
    """One-time (load-time) weight preparation.

    w_gate_up: [2*I, H]  (PyTorch nn.Linear layout: [out_features, in_features])
    w_down:    [H, I]
    b_down:    [H]
    dtype:     weight/activation dtype; bf16 strongly recommended for real
               TeleChat2 sizes (halves HBM traffic, doubles MXU rate).
    """
    two_I, H = w_gate_up.shape
    I = two_I // 2
    assert w_gate_up.shape == (2 * I, H)
    assert w_down.shape == (H, I)
    assert b_down.shape == (H,)
    if dtype is None:
        dtype = w_gate_up.dtype
    if block_i is None:
        block_i = _GEN_DEFAULTS[_tpu_generation()][1]

    # I tile: multiple of 128, no larger than the (128-padded) intermediate dim.
    block_i = max(128, min(int(block_i), _round_up(I, 128)))
    block_i = _round_up(block_i, 128)
    Ip = _round_up(I, block_i)
    n_i = Ip // block_i
    pad_i = Ip - I

    # gate = first half of the out dim, up = second half (SiluAndMul split order).
    w_gate = w_gate_up[:I, :].T.astype(dtype)   # (H, I)
    w_up = w_gate_up[I:, :].T.astype(dtype)     # (H, I)
    if pad_i:
        # Exact: silu(0) * anything == 0 and the matching w_down rows are zero.
        w_gate = jnp.pad(w_gate, ((0, 0), (0, pad_i)))
        w_up = jnp.pad(w_up, ((0, 0), (0, pad_i)))

    # Pre-tiled (n_i, H, 2*block_i): tile j = [gate[:, j*bi:(j+1)*bi] | up[:, ...]],
    # so each gate+up weight tile is ONE contiguous DMA (no strided rows).
    w_gu = jnp.concatenate(
        [w_gate.reshape(H, n_i, 1, block_i),
         w_up.reshape(H, n_i, 1, block_i)],
        axis=2)                                               # (H, n_i, 2, bi)
    w_gu = jnp.transpose(w_gu, (1, 0, 2, 3)).reshape(n_i, H, 2 * block_i)

    w_down_t = w_down.T.astype(dtype)                          # (Ip, H): tiles contiguous
    if pad_i:
        w_down_t = jnp.pad(w_down_t, ((0, pad_i), (0, 0)))

    b = b_down.reshape(1, H).astype(jnp.float32)

    return {
        "w_gu": w_gu,            # (n_i, H, 2*block_i), tile-contiguous
        "w_down_t": w_down_t,    # (Ip, H)
        "b": b,                  # (1, H) float32
        "hidden": H,
        "block_i": block_i,
        "n_i": n_i,
        "dtype": dtype,
    }


def telechat2_mlp(x, prepped, *, block_m=None):
    """
    x:       [tokens, H]
    prepped: output of prepare_telechat2_mlp_weights
    returns: [tokens, H] in x.dtype
    """
    tokens, H = x.shape
    assert H == prepped["hidden"]
    dtype = prepped["dtype"]
    block_i = prepped["block_i"]
    n_i = prepped["n_i"]
    out_dtype = x.dtype

    gen = _tpu_generation()
    if block_m is None:
        # AI ~= tm FLOP/byte on the weight stream -> generation-specific defaults:
        # v6e/v5p: 512 (ridge ~700 FLOP/B), v5e: 320 (ridge ~240), v7x: 384 (ridge ~310).
        block_m = _GEN_DEFAULTS[gen][0]

    # On v7x (64 MiB VMEM) single-buffer the j-invariant x / bias streams to
    # free ~one tm*H buffer for a larger token tile.
    single_buffer_const = (gen == "v7x")
    x_bufs = 1 if single_buffer_const else 2
    bias_bufs = 1 if single_buffer_const else 2

    wsz = jnp.dtype(dtype).itemsize
    osz = jnp.dtype(out_dtype).itemsize

    cap = _vmem_capacity_bytes()
    budget = min(int(cap * 0.875), cap - (8 << 20))   # physical VMEM minus headroom

    # Token tile: largest that fits the VMEM budget (clamped to the token count).
    tm = max(8, min(_round_up(int(block_m), 8), _round_up(tokens, 8)))
    while True:
        est = _vmem_estimate(tm, H, block_i, wsz, osz, x_bufs, bias_bufs)
        if int(1.2 * est) <= budget or tm <= 8:
            break
        new_tm = max(8, _round_up(tm // 2, 8))
        if new_tm >= tm:
            break
        tm = new_tm

    tokens_p = _round_up(tokens, tm)
    n_m = tokens_p // tm

    x_in = x.astype(dtype)
    if tokens_p != tokens:
        x_in = jnp.pad(x_in, ((0, tokens_p - tokens), (0, 0)))

    # Requested scoped VMEM never exceeds the physical budget.
    vmem_limit = int(min(budget, max(32 << 20, int(1.3 * est))))

    if single_buffer_const:
        x_spec = pl.BlockSpec((tm, H), lambda i, j: (i, 0),
                              pipeline_mode=pl.Buffered(1))
        b_spec = pl.BlockSpec((1, H), lambda i, j: (0, 0),
                              pipeline_mode=pl.Buffered(1))
    else:
        x_spec = pl.BlockSpec((tm, H), lambda i, j: (i, 0))
        b_spec = pl.BlockSpec((1, H), lambda i, j: (0, 0))

    kernel = functools.partial(_mlp_kernel, block_i=block_i)

    out = pl.pallas_call(
        kernel,
        out_shape=jax.ShapeDtypeStruct((tokens_p, H), out_dtype),
        grid_spec=pltpu.PrefetchScalarGridSpec(
            num_scalar_prefetch=0,
            grid=(n_m, n_i),
            in_specs=[
                x_spec,
                # Leading (tile) dim squeezed: one contiguous DMA per weight tile.
                pl.BlockSpec((None, H, 2 * block_i), lambda i, j: (j, 0, 0)),
                pl.BlockSpec((block_i, H), lambda i, j: (j, 0)),
                b_spec,
            ],
            out_specs=pl.BlockSpec((tm, H), lambda i, j: (i, 0)),
            scratch_shapes=[pltpu.VMEM((tm, H), jnp.float32)],
        ),
        compiler_params=pltpu.CompilerParams(
            dimension_semantics=("parallel", "arbitrary"),
            vmem_limit_bytes=vmem_limit,
        ),
    )(x_in, prepped["w_gu"], prepped["w_down_t"], prepped["b"])

    # TODO(synk): v7x decode (n_m == 1): split the I reduction across the two
    #   TensorCores (core_map + per-core partial accumulators) so both HBM ports
    #   and MXUs are used when the token axis has extent 1.
    # TODO(synk): fp8 weight quantization (per-tile scales in the epilogue) for
    #   the bandwidth-bound decode path on v7x.

    return out[:tokens]


def telechat2_mlp_ref(x, w_gate_up, w_down, b_down):
    gate_up = x @ w_gate_up.T
    I = w_gate_up.shape[0] // 2
    gate, up = gate_up[:, :I], gate_up[:, I:]
    h = jax.nn.silu(gate) * up
    return h @ w_down.T + b_down


if __name__ == "__main__":
    hidden_size = 256
    intermediate_size = 512
    batch, seq = 2, 8

    key = jax.random.PRNGKey(0)
    k0, k1, k2, k3 = jax.random.split(key, 4)

    x = jax.random.normal(k0, (batch, seq, hidden_size), dtype=jnp.float32)
    # PyTorch nn.Linear layout: [out_features, in_features].
    w_gate_up = jax.random.normal(
        k1, (2 * intermediate_size, hidden_size), dtype=jnp.float32) * 0.02
    w_down = jax.random.normal(
        k2, (hidden_size, intermediate_size), dtype=jnp.float32) * 0.02
    b_down = jax.random.normal(k3, (hidden_size,), dtype=jnp.float32) * 0.02

    x2d = x.reshape(batch * seq, hidden_size)
    ref = telechat2_mlp_ref(x2d, w_gate_up, w_down, b_down)

    # --- f32 path: exercises token tiling (2 tiles) and the I reduction (2 tiles).
    prepped_f32 = prepare_telechat2_mlp_weights(
        w_gate_up, w_down, b_down, block_i=256, dtype=jnp.float32)
    out = jax.block_until_ready(telechat2_mlp(x2d, prepped_f32, block_m=8))
    assert out.shape == (batch * seq, hidden_size)
    assert jnp.allclose(out, ref, atol=1e-4, rtol=1e-4), "f32 mismatch vs reference"

    # --- bf16 weights/activations (recommended production dtype), f32 accumulation,
    #     default (generation-tuned) block_m path.
    prepped_bf16 = prepare_telechat2_mlp_weights(
        w_gate_up, w_down, b_down, block_i=256, dtype=jnp.bfloat16)
    out_bf16 = jax.block_until_ready(
        telechat2_mlp(x2d, prepped_bf16)).astype(jnp.float32)
    assert jnp.allclose(out_bf16, ref, atol=5e-2, rtol=5e-2), "bf16 mismatch"

    # restore [batch, seq, hidden] if the caller wants the 3D view
    _ = out.reshape(batch, seq, hidden_size)
    print("KERNEL_OK")
</pallas_src>

<mosaic_0001>
module attributes {stable_mosaic.version = 11 : i64} {
  func.func @_mlp_kernel(%arg0: i32, %arg1: i32, %arg2: memref<8x256xf32, #tpu.memory_space<vmem>>, %arg3: memref<1x256x512xf32, #tpu.memory_space<vmem>>, %arg4: memref<256x256xf32, #tpu.memory_space<vmem>>, %arg5: memref<1x256xf32, #tpu.memory_space<vmem>>, %arg6: memref<8x256xf32, #tpu.memory_space<vmem>>, %arg7: memref<8x256xf32, #tpu.memory_space<vmem>>) attributes {dimension_semantics = [#tpu.dimension_semantics<parallel>, #tpu.dimension_semantics<arbitrary>], iteration_bounds = array<i64: 2, 2>, scalar_prefetch = 0 : i64, scratch_operands = 1 : i64, tpu.core_type = #tpu.core_type<tc>, window_params = [{transform_indices = @transform_0, window_bounds = array<i64: 8, 256>}, {transform_indices = @transform_1, window_bounds = array<i64: 1, 256, 512>}, {transform_indices = @transform_2, window_bounds = array<i64: 256, 256>}, {pipeline_mode = #tpu.pipeline_mode<synchronous>, transform_indices = @transform_3, window_bounds = array<i64: 1, 256>}, {transform_indices = @transform_4, window_bounds = array<i64: 8, 256>}]} {
    %c0_i32 = arith.constant 0 : i32
    %0 = arith.cmpi eq, %arg1, %c0_i32 : i32
    %1 = arith.extui %0 : i1 to i32
    %c0_i32_0 = arith.constant 0 : i32
    %2 = arith.cmpi ne, %1, %c0_i32_0 : i32
    scf.if %2 {
      %c0_14 = arith.constant 0 : index
      %c0_15 = arith.constant 0 : index
      %24 = vector.load %arg5[%c0_14, %c0_15] : memref<1x256xf32, #tpu.memory_space<vmem>>, vector<1x256xf32>
      %25 = vector.shape_cast %24 : vector<1x256xf32> to vector<1x256xf32>
      %26 = vector.broadcast %25 : vector<1x256xf32> to vector<8x256xf32>
      %c0_16 = arith.constant 0 : index
      %c0_17 = arith.constant 0 : index
      %27 = vector.load %arg7[%c0_16, %c0_17] : memref<8x256xf32, #tpu.memory_space<vmem>>, vector<8x256xf32>
      tpu.vector_store %arg7[%c0_16, %c0_17], %26 {strides = array<i32>} : memref<8x256xf32, #tpu.memory_space<vmem>>, vector<8x256xf32>,
    } else {
    }
    %c0 = arith.constant 0 : index
    %c0_1 = arith.constant 0 : index
    %3 = vector.load %arg2[%c0, %c0_1] : memref<8x256xf32, #tpu.memory_space<vmem>>, vector<8x256xf32>
    %c0_2 = arith.constant 0 : index
    %c0_3 = arith.constant 0 : index
    %c0_4 = arith.constant 0 : index
    %4 = vector.load %arg3[%c0_2, %c0_3, %c0_4] : memref<1x256x512xf32, #tpu.memory_space<vmem>>, vector<1x256x512xf32>
    %5 = vector.shape_cast %4 : vector<1x256x512xf32> to vector<256x512xf32>
    %cst = arith.constant dense<0.000000e+00> : vector<8x512xf32>
    %6 = tpu.matmul %3, %5, %cst {dimension_numbers = #tpu.dot_dimension_numbers<[1], [0], [0], [1], [0, 0, 1, 1], [], []>} : vector<8x256xf32>, vector<256x512xf32>, vector<8x512xf32> -> vector<8x512xf32>
    %7 = vector.extract_strided_slice %6 {offsets = [0, 0], sizes = [8, 256], strides = [1, 1]} : vector<8x512xf32> to vector<8x256xf32>
    %8 = vector.extract_strided_slice %6 {offsets = [0, 256], sizes = [8, 256], strides = [1, 1]} : vector<8x512xf32> to vector<8x256xf32>
    %9 = arith.negf %7 : vector<8x256xf32>
    %10 = math.exp %9 : vector<8x256xf32>
    %cst_5 = arith.constant 1.000000e+00 : f32
    %11 = vector.broadcast %cst_5 : f32 to vector<8x256xf32>
    %12 = arith.addf %11, %10 : vector<8x256xf32>
    %13 = arith.divf %11, %12 : vector<8x256xf32>
    %14 = arith.mulf %7, %13 : vector<8x256xf32>
    %15 = arith.mulf %14, %8 : vector<8x256xf32>
    %c0_6 = arith.constant 0 : index
    %c0_7 = arith.constant 0 : index
    %16 = vector.load %arg7[%c0_6, %c0_7] : memref<8x256xf32, #tpu.memory_space<vmem>>, vector<8x256xf32>
    %c0_8 = arith.constant 0 : index
    %c0_9 = arith.constant 0 : index
    %17 = vector.load %arg4[%c0_8, %c0_9] : memref<256x256xf32, #tpu.memory_space<vmem>>, vector<256x256xf32>
    %cst_10 = arith.constant dense<0.000000e+00> : vector<8x256xf32>
    %18 = tpu.matmul %15, %17, %cst_10 {dimension_numbers = #tpu.dot_dimension_numbers<[1], [0], [0], [1], [0, 0, 1, 1], [], []>} : vector<8x256xf32>, vector<256x256xf32>, vector<8x256xf32> -> vector<8x256xf32>
    %19 = arith.addf %16, %18 : vector<8x256xf32>
    %c0_11 = arith.constant 0 : index
    %c0_12 = arith.constant 0 : index
    %20 = vector.load %arg7[%c0_11, %c0_12] : memref<8x256xf32, #tpu.memory_space<vmem>>, vector<8x256xf32>
    tpu.vector_store %arg7[%c0_11, %c0_12], %19 {strides = array<i32>} : memref<8x256xf32, #tpu.memory_space<vmem>>, vector<8x256xf32>,
    %c1_i32 = arith.constant 1 : i32
    %21 = arith.cmpi eq, %arg1, %c1_i32 : i32
    %22 = arith.extui %21 : i1 to i32
    %c0_i32_13 = arith.constant 0 : i32
    %23 = arith.cmpi ne, %22, %c0_i32_13 : i32
    scf.if %23 {
      %c0_14 = arith.constant 0 : index
      %c0_15 = arith.constant 0 : index
      %24 = vector.load %arg7[%c0_14, %c0_15] : memref<8x256xf32, #tpu.memory_space<vmem>>, vector<8x256xf32>
      %c0_16 = arith.constant 0 : index
      %c0_17 = arith.constant 0 : index
      %25 = vector.load %arg6[%c0_16, %c0_17] : memref<8x256xf32, #tpu.memory_space<vmem>>, vector<8x256xf32>
      tpu.vector_store %arg6[%c0_16, %c0_17], %24 {strides = array<i32>} : memref<8x256xf32, #tpu.memory_space<vmem>>, vector<8x256xf32>,
    } else {
    }
    return
  }
  func.func @transform_0(%arg0: i32, %arg1: i32) -> (i32, i32) {
    %c0_i32 = arith.constant 0 : i32
    %c0_i32_0 = arith.constant 0 : i32
    return %arg0, %c0_i32 : i32, i32
  }
  func.func @transform_1(%arg0: i32, %arg1: i32) -> (i32, i32, i32) {
    %c0_i32 = arith.constant 0 : i32
    %c0_i32_0 = arith.constant 0 : i32
    %c0_i32_1 = arith.constant 0 : i32
    return %arg1, %c0_i32, %c0_i32_0 : i32, i32, i32
  }
  func.func @transform_2(%arg0: i32, %arg1: i32) -> (i32, i32) {
    %c0_i32 = arith.constant 0 : i32
    %c0_i32_0 = arith.constant 0 : i32
    return %arg1, %c0_i32 : i32, i32
  }
  func.func @transform_3(%arg0: i32, %arg1: i32) -> (i32, i32) {
    %c0_i32 = arith.constant 0 : i32
    %c0_i32_0 = arith.constant 0 : i32
    %c0_i32_1 = arith.constant 0 : i32
    return %c0_i32, %c0_i32_0 : i32, i32
  }
  func.func @transform_4(%arg0: i32, %arg1: i32) -> (i32, i32) {
    %c0_i32 = arith.constant 0 : i32
    %c0_i32_0 = arith.constant 0 : i32
    return %arg0, %c0_i32 : i32, i32
  }
}

</mosaic_0001>

<llo_original>
// kernel: tpu_custom_call.1
$region0: #{tpu_custom_call.1}
  #allocation0 [shape = 'u32[]', space=smem, size = 0x4, offset = 0x4, fixed_abs, tag = 'smem constant byte address 0x4 - core index']
  #allocation1 [shape = 'u32[144,128]{1,0:T(1,128)}', space=vmem, size = 0x12000, scoped, tag = 'internal scratch']
  #allocation2 [shape = 'f32[8,256]{1,0:T(8,128)}', space=vmem, size = 0x2000, scoped, tag = 'scratch operand']
  %s0 = inlined_call_operand.hbm [shape: f32[16,256], index: 0, kind: input, shape index: {}]
  %s1 = inlined_call_operand.hbm [shape: f32[2,256,512], index: 1, kind: input, shape index: {}]
  %s2 = inlined_call_operand.hbm [shape: f32[512,256], index: 2, kind: input, shape index: {}]
  %s3 = inlined_call_operand.vmem [shape: f32[1,256], index: 3, kind: input, shape index: {}]
  %s4 = inlined_call_operand.hbm [shape: f32[16,256], index: 4, kind: output, shape index: {}]
  %s5 = sld [smem:[#allocation0]]
  $region69: #{tpu_custom_call.1} parent=0
    _
  %s7 = ssub.s32 1, %s5
  %s8 = scalar_select 0, %s7, %s5
  $region1: #{tpu_custom_call.1} parent=0
    #allocation3 [shape = 'u8[16384]{0}', space=vmem, size = 0x4000, scoped, tag = 'input window, operand 0']
    #allocation4 [shape = 's32[2]{0}', space=sflag, size = 0x8, scoped, tag = 'scoped memory for tpu_custom_call.1']
    #allocation5 [shape = 's32[2]{0}', space=sflag, size = 0x8, scoped, tag = 'scoped memory for tpu_custom_call.1']
    #allocation6 [shape = 'u8[1048576]{0}', space=vmem, size = 0x100000, scoped, tag = 'input window, operand 1']
    #allocation7 [shape = 's32[2]{0}', space=sflag, size = 0x8, scoped, tag = 'scoped memory for tpu_custom_call.1']
    #allocation8 [shape = 'u8[524288]{0}', space=vmem, size = 0x80000, scoped, tag = 'input window, operand 2']
    #allocation9 [shape = 'u8[16384]{0}', space=vmem, size = 0x4000, scoped, tag = 'output window, operand 0']
    %9 = vsyncpa [#allocation4], 0
    %s10 = scalar_lea.sflag [#allocation4], 1
    %11 = vsyncpa %s10, 0
    %12 = vsyncpa [#allocation7], 0
    %s13 = scalar_lea.sflag [#allocation7], 1
    %14 = vsyncpa %s13, 0
    %15 = vsyncpa [#allocation5], 0
    %s16 = scalar_lea.sflag [#allocation5], 1
    %17 = vsyncpa %s16, 0
    loop: start=0, step=1, limit=6
    $region2: #{tpu_custom_call.1} parent=1 // loop_pre_header
      _
    $region3: #{tpu_custom_call.1} parent=1 // loop_header
      %s19 = sphi 0, %s23
      %p20 = scmp.ge.s32.totalorder %s19, 6
      %s26 = sphi 0, %s38
      %s27 = sphi 0, %s34
      %s28 = sphi 0, %s26
      %s29 = sphi 0, %s27
      %s30 = sphi 0, %s28
      %s31 = sphi 0, %s29
      %s41 = sphi 0, %s43
      %s44 = sphi 0, %s41
      %s45 = sphi 0, %s44
      %s61 = sphi 0, %s45
      %s67 = sphi 0, %s69
      %s70 = sphi 0, %s67
      %s71 = sphi 0, %s70
      %s87 = sphi 0, %s71
      %s93 = sphi 0, %s95
      %s96 = sphi 0, %s93
      %s97 = sphi 0, %s96
      %s113 = sphi 0, %s97
      %s117 = sphi 0, %s117
      %s119 = sphi 0, %s117
      %s120 = sphi 0, %s119
      %s134 = sphi 0, %s120
      %s140 = sphi 0, %s142
      %s143 = sphi 0, %s140
      %s144 = sphi 0, %s143
      %s160 = sphi 0, %s144
    $region4: #{tpu_custom_call.1} parent=1 // loop_header_branch
      %22 = sbr.rel (%p20) target = $region8
    $region5: #{tpu_custom_call.1} parent=1 // loop_body
      %s24 = ssub.s32 %s19, 1
      %s25 = ssub.s32 %s19, 2
      %s32 = sadd.s32 1, %s27
      %p33 = scmp.ge.s32.totalorder %s32, 2
      %s34 = scalar_select %p33, 0, %s32
      %s35 = sadd.s32 1, %s26
      %s36 = scalar_select %p33, %s35, %s26
      %p37 = scmp.ge.s32.totalorder %s36, 2
      %s38 = scalar_select %p37, 0, %s36
      %s39 = ssub.s32 %s26, %s38
      %p40 = scmp.eq.s32.totalorder %s39, 0
      %s42 = sadd.s32 %s41, 1
      %s43 = scalar_select %p40, %s41, %s42
      %p46 = pneg %p40
      %p47 = scmp.eq.s32.totalorder %s19, 3
      %p48 = por %p46, %p47
      %p49 = scmp.ne.s32.totalorder %s41, %s44
      %p50 = scmp.eq.s32.totalorder %s19, 0
      %p51 = por %p49, %p50
      %p52 = scmp.ne.s32.totalorder %s41, %s44
      %p53 = scmp.eq.s32.totalorder %s24, 3
      %p54 = por %p52, %p53
      %p55 = scmp.ne.s32.totalorder %s44, %s45
      %p56 = scmp.eq.s32.totalorder %s24, 0
      %p57 = por %p55, %p56
      %p58 = scmp.ne.s32.totalorder %s44, %s45
      %p59 = scmp.eq.s32.totalorder %s25, 3
      %p60 = por %p58, %p59
      %p62 = scmp.ne.s32.totalorder %s45, %s61
      %p63 = scmp.eq.s32.totalorder %s25, 0
      %p64 = por %p62, %p63
      %s65 = ssub.s32 %s27, %s34
      %p66 = scmp.eq.s32.totalorder %s65, 0
      %s68 = sadd.s32 %s67, 1
      %s69 = scalar_select %p66, %s67, %s68
      %p72 = pneg %p66
      %p73 = scmp.eq.s32.totalorder %s19, 3
      %p74 = por %p72, %p73
      %p75 = scmp.ne.s32.totalorder %s67, %s70
      %p76 = scmp.eq.s32.totalorder %s19, 0
      %p77 = por %p75, %p76
      %p78 = scmp.ne.s32.totalorder %s67, %s70
      %p79 = scmp.eq.s32.totalorder %s24, 3
      %p80 = por %p78, %p79
      %p81 = scmp.ne.s32.totalorder %s70, %s71
      %p82 = scmp.eq.s32.totalorder %s24, 0
      %p83 = por %p81, %p82
      %p84 = scmp.ne.s32.totalorder %s70, %s71
      %p85 = scmp.eq.s32.totalorder %s25, 3
      %p86 = por %p84, %p85
      %p88 = scmp.ne.s32.totalorder %s71, %s87
      %p89 = scmp.eq.s32.totalorder %s25, 0
      %p90 = por %p88, %p89
      %s91 = ssub.s32 %s27, %s34
      %p92 = scmp.eq.s32.totalorder %s91, 0
      %s94 = sadd.s32 %s93, 1
      %s95 = scalar_select %p92, %s93, %s94
      %p98 = pneg %p92
      %p99 = scmp.eq.s32.totalorder %s19, 3
      %p100 = por %p98, %p99
      %p101 = scmp.ne.s32.totalorder %s93, %s96
      %p102 = scmp.eq.s32.totalorder %s19, 0
      %p103 = por %p101, %p102
      %p104 = scmp.ne.s32.totalorder %s93, %s96
      %p105 = scmp.eq.s32.totalorder %s24, 3
      %p106 = por %p104, %p105
      %p107 = scmp.ne.s32.totalorder %s96, %s97
      %p108 = scmp.eq.s32.totalorder %s24, 0
      %p109 = por %p107, %p108
      %p110 = scmp.ne.s32.totalorder %s96, %s97
      %p111 = scmp.eq.s32.totalorder %s25, 3
      %p112 = por %p110, %p111
      %p114 = scmp.ne.s32.totalorder %s97, %s113
      %p115 = scmp.eq.s32.totalorder %s25, 0
      %p116 = por %p114, %p115
      %s118 = sadd.s32 %s117, 1
      %p121 = scmp.eq.s32.totalorder %s19, 3
      %p122 = scmp.ne.s32.totalorder %s117, %s119
      %p123 = scmp.eq.s32.totalorder %s19, 0
      %p124 = por %p122, %p123
      %p125 = scmp.ne.s32.totalorder %s117, %s119
      %p126 = scmp.eq.s32.totalorder %s24, 3
      %p127 = por %p125, %p126
      %p128 = scmp.ne.s32.totalorder %s119, %s120
      %p129 = scmp.eq.s32.totalorder %s24, 0
      %p130 = por %p128, %p129
      %p131 = scmp.ne.s32.totalorder %s119, %s120
      %p132 = scmp.eq.s32.totalorder %s25, 3
      %p133 = por %p131, %p132
      %p135 = scmp.ne.s32.totalorder %s120, %s134
      %p136 = scmp.eq.s32.totalorder %s25, 0
      %p137 = por %p135, %p136
      %s138 = ssub.s32 %s26, %s38
      %p139 = scmp.eq.s32.totalorder %s138, 0
      %s141 = sadd.s32 %s140, 1
      %s142 = scalar_select %p139, %s140, %s141
      %p145 = pneg %p139
      %p146 = scmp.eq.s32.totalorder %s19, 3
      %p147 = por %p145, %p146
      %p148 = scmp.ne.s32.totalorder %s140, %s143
      %p149 = scmp.eq.s32.totalorder %s19, 0
      %p150 = por %p148, %p149
      %p151 = scmp.ne.s32.totalorder %s140, %s143
      %p152 = scmp.eq.s32.totalorder %s24, 3
      %p153 = por %p151, %p152
      %p154 = scmp.ne.s32.totalorder %s143, %s144
      %p155 = scmp.eq.s32.totalorder %s24, 0
      %p156 = por %p154, %p155
      %p157 = scmp.ne.s32.totalorder %s143, %s144
      %p158 = scmp.eq.s32.totalorder %s25, 3
      %p159 = por %p157, %p158
      %p161 = scmp.ne.s32.totalorder %s144, %s160
      %p162 = scmp.eq.s32.totalorder %s25, 0
      %p163 = por %p161, %p162
      %p164 = scmp.le.s32.totalorder 1, %s19
      %p165 = scmp.lt.s32.totalorder %s19, 5
      %p166 = pnand %p164, %p165
      %p167 = pneg %p166
      // Predicated region
      $region9: #{tpu_custom_call.1} parent=5 // pred_check
        _
      $region10: #{tpu_custom_call.1} parent=5 // pred_check_branch
        %169 = sbr.rel (%p166) target = $region12
      $region11: #{tpu_custom_call.1} parent=5 // pred_region
        %s170 = ssub.s32 %s19, 1
        // Predicated region
        $region13: #{tpu_custom_call.1} parent=11 // pred_check
          %p171 = pneg %p130
        $region14: #{tpu_custom_call.1} parent=11 // pred_check_branch
          %173 = sbr.rel (%p171) target = $region16
        $region15: #{tpu_custom_call.1} parent=11 // pred_region
          _
        $region16: #{tpu_custom_call.1} parent=11 // pred_fallthru
          _
      $region12: #{tpu_custom_call.1} parent=5 // pred_fallthru
        _
      %p174 = scmp.lt.s32.totalorder %s19, 4
      // Predicated region
      $region17: #{tpu_custom_call.1} parent=5 // pred_check
        %p175 = pneg %p174
      $region18: #{tpu_custom_call.1} parent=5 // pred_check_branch
        %177 = sbr.rel (%p175) target = $region20
      $region19: #{tpu_custom_call.1} parent=5 // pred_region
        // Predicated region
        $region21: #{tpu_custom_call.1} parent=19 // pred_check
          %p178 = pneg %p51
        $region22: #{tpu_custom_call.1} parent=19 // pred_check_branch
          %180 = sbr.rel (%p178) target = $region24
        $region23: #{tpu_custom_call.1} parent=19 // pred_region
          %s181 = sand.u32 %s41, 1
          %s182 = scalar_lea.sflag [#allocation4], %s181
          %s183 = sand.u32 %s41, 1
          %s184 = smul.addr %s183, 16
          %s185 = scalar_lea.vmem [#allocation3], %s184
          %s187 = ssub.s32 256, 256
          %188 = vsyncadd %s182, %s187
          %s189 = smul.addr %s26, 2
          %s190 = smul.addr %s189, 128
          %s191 = scalar_lea.hbm %s0, %s190
          %s193 = sshll.u32 %s185, 4
          %s194 = int_to_ptr.vmem [resolvable:$true] %s193
          %196 = dma.hbm_to_vmem [thread:$0]  %s191, 256, %s194, %s182
        $region24: #{tpu_custom_call.1} parent=19 // pred_fallthru
          _
        // Predicated region
        $region25: #{tpu_custom_call.1} parent=19 // pred_check
          %p197 = pneg %p77
        $region26: #{tpu_custom_call.1} parent=19 // pred_check_branch
          %199 = sbr.rel (%p197) target = $region28
        $region27: #{tpu_custom_call.1} parent=19 // pred_region
          %s200 = sand.u32 %s19, 1
          %s201 = scalar_lea.sflag [#allocation7], %s200
          %s202 = sand.u32 %s67, 1
          %s203 = smul.addr %s202, 1024
          %s204 = scalar_lea.vmem [#allocation6], %s203
          %s206 = ssub.s32 16384, 16384
          %207 = vsyncadd %s201, %s206
          %s208 = smul.addr %s27, 128
          %s209 = smul.addr %s208, 128
          %s210 = scalar_lea.hbm %s1, %s209
          %s211 = sshll.u32 %s204, 4
          %s212 = int_to_ptr.vmem [resolvable:$true] %s211
          %217 = dma.hbm_to_vmem [thread:$0]  %s210, 16384, %s212, %s201, 512, 512, 32
        $region28: #{tpu_custom_call.1} parent=19 // pred_fallthru
          _
        // Predicated region
        $region29: #{tpu_custom_call.1} parent=19 // pred_check
          %p218 = pneg %p103
        $region30: #{tpu_custom_call.1} parent=19 // pred_check_branch
          %220 = sbr.rel (%p218) target = $region32
        $region31: #{tpu_custom_call.1} parent=19 // pred_region
          %s221 = sand.u32 %s19, 1
          %s222 = scalar_lea.sflag [#allocation7], %s221
          %s223 = sand.u32 %s93, 1
          %s224 = smul.addr %s223, 512
          %s225 = scalar_lea.vmem [#allocation8], %s224
          %s226 = smul.u32 32, %s27
          %s228 = ssub.s32 8192, 8192
          %229 = vsyncadd %s222, %s228
          %s230 = smul.addr %s226, 2
          %s231 = smul.addr %s230, 128
          %s232 = scalar_lea.hbm %s2, %s231
          %s233 = sshll.u32 %s225, 4
          %s234 = int_to_ptr.vmem [resolvable:$true] %s233
          %239 = dma.hbm_to_vmem [thread:$0]  %s232, 8192, %s234, %s222, 256, 256, 16
        $region32: #{tpu_custom_call.1} parent=19 // pred_fallthru
          _
      $region20: #{tpu_custom_call.1} parent=5 // pred_fallthru
        _
      %p240 = scmp.le.s32.totalorder 1, %s19
      %p241 = scmp.lt.s32.totalorder %s19, 5
      %p242 = pnand %p240, %p241
      %p243 = pneg %p242
      // Predicated region
      $region33: #{tpu_custom_call.1} parent=5 // pred_check
        _
      $region34: #{tpu_custom_call.1} parent=5 // pred_check_branch
        %245 = sbr.rel (%p242) target = $region36
      $region35: #{tpu_custom_call.1} parent=5 // pred_region
        %s246 = ssub.s32 %s19, 1
        %s247 = sand.u32 %s44, 1
        %s248 = scalar_lea.sflag [#allocation4], %s247
        %s249 = sand.u32 %s44, 1
        %s250 = smul.addr %s249, 16
        %s251 = scalar_lea.vmem [#allocation3], %s250
        // Predicated region
        $region37: #{tpu_custom_call.1} parent=35 // pred_check
          %p252 = pneg %p57
        $region38: #{tpu_custom_call.1} parent=35 // pred_check_branch
          %254 = sbr.rel (%p252) target = $region40
        $region39: #{tpu_custom_call.1} parent=35 // pred_region
          %255 = dma.done %s248, 256
        $region40: #{tpu_custom_call.1} parent=35 // pred_fallthru
          _
        %s256 = sand.u32 %s24, 1
        %s257 = scalar_lea.sflag [#allocation7], %s256
        %s258 = sand.u32 %s70, 1
        %s259 = smul.addr %s258, 1024
        %s260 = scalar_lea.vmem [#allocation6], %s259
        // Predicated region
        $region41: #{tpu_custom_call.1} parent=35 // pred_check
          %p261 = pneg %p83
        $region42: #{tpu_custom_call.1} parent=35 // pred_check_branch
          %263 = sbr.rel (%p261) target = $region44
        $region43: #{tpu_custom_call.1} parent=35 // pred_region
          %264 = dma.done %s257, 16384
        $region44: #{tpu_custom_call.1} parent=35 // pred_fallthru
          _
        %s265 = sand.u32 %s24, 1
        %s266 = scalar_lea.sflag [#allocation7], %s265
        %s267 = sand.u32 %s96, 1
        %s268 = smul.addr %s267, 512
        %s269 = scalar_lea.vmem [#allocation8], %s268
        // Predicated region
        $region45: #{tpu_custom_call.1} parent=35 // pred_check
          %p270 = pneg %p109
        $region46: #{tpu_custom_call.1} parent=35 // pred_check_branch
          %272 = sbr.rel (%p270) target = $region48
        $region47: #{tpu_custom_call.1} parent=35 // pred_region
          %273 = dma.done %s266, 8192
        $region48: #{tpu_custom_call.1} parent=35 // pred_fallthru
          _
        %s274 = sand.u32 %s44, 1
        %s275 = scalar_lea.sflag [#allocation4], %s274
        %s276 = sand.u32 %s44, 1
        %s277 = smul.addr %s276, 16
        %s278 = scalar_lea.vmem [#allocation3], %s277
        %p279 = pneg %p57
        %p280 = pneg %p54
        %s281 = sand.u32 %s24, 1
        %s282 = scalar_lea.sflag [#allocation7], %s281
        %s283 = sand.u32 %s70, 1
        %s284 = smul.addr %s283, 1024
        %s285 = scalar_lea.vmem [#allocation6], %s284
        %p286 = pneg %p83
        %p287 = pneg %p80
        %s288 = sand.u32 %s24, 1
        %s289 = scalar_lea.sflag [#allocation7], %s288
        %s290 = sand.u32 %s96, 1
        %s291 = smul.addr %s290, 512
        %s292 = scalar_lea.vmem [#allocation8], %s291
        %p293 = pneg %p109
        %p294 = pneg %p106
        %p295 = pneg %p130
        %p296 = pneg %p127
        %p297 = pneg %p156
        %p298 = pneg %p153
        %s299 = sand.u32 %s143, 1
        %s300 = scalar_lea.sflag [#allocation5], %s299
        %s301 = sand.u32 %s143, 1
        %s302 = smul.addr %s301, 16
        %s303 = scalar_lea.vmem [#allocation9], %s302
        %s304 = smul.u32 32, %s29
        %p305 = scmp.eq.s32.totalorder %s29, 0
        // Predicated region
        $region49: #{tpu_custom_call.1} parent=35 // pred_check
          %p306 = pneg %p305
        $region50: #{tpu_custom_call.1} parent=35 // pred_check_branch
          %308 = sbr.rel (%p306) target = $region52
        $region51: #{tpu_custom_call.1} parent=35 // pred_region
          %v309 = vld [vmem:[%s3] sm:$0x3]
          %v311 = vlaneseq
          %v312 = vshrl.u32 %v311, 7
          %v313 = vsub.s32 0, %v312
          %v314 = vrot.slane %v309, %v313
          %v315 = vlaneseq
          %v316 = vshrl.u32 %v315, 7
          %v317 = vsub.s32 1, %v316
          %v318 = vrot.slane %v309, %v317
          %321 = vst [vmem:[#allocation2] sm:$0xff] %v314
          %322 = vst [vmem:[#allocation2 + $0x8] sm:$0xff] %v318
        $region52: #{tpu_custom_call.1} parent=35 // pred_fallthru
          _
        %v323 = vld [vmem:[%s251] sm:$0xff]
        %v324 = vld [vmem:[%s251 + $0x8] sm:$0xff]
        %v325 = vld [vmem:[%s260] sm:$0xff]
        %v326 = vld [vmem:[%s260 + $0x8] sm:$0xff]
        %v327 = vld [vmem:[%s260 + $0x10] sm:$0xff]
        %v328 = vld [vmem:[%s260 + $0x18] sm:$0xff]
        %v329 = vld [vmem:[%s260 + $0x20] sm:$0xff]
        %v330 = vld [vmem:[%s260 + $0x28] sm:$0xff]
        %v331 = vld [vmem:[%s260 + $0x30] sm:$0xff]
        %v332 = vld [vmem:[%s260 + $0x38] sm:$0xff]
        %v333 = vld [vmem:[%s260 + $0x40] sm:$0xff]
        %v334 = vld [vmem:[%s260 + $0x48] sm:$0xff]
        %v335 = vld [vmem:[%s260 + $0x50] sm:$0xff]
        %v336 = vld [vmem:[%s260 + $0x58] sm:$0xff]
        %v337 = vld [vmem:[%s260 + $0x60] sm:$0xff]
        %v338 = vld [vmem:[%s260 + $0x68] sm:$0xff]
        %v339 = vld [vmem:[%s260 + $0x70] sm:$0xff]
        %v340 = vld [vmem:[%s260 + $0x78] sm:$0xff]
        %v341 = vld [vmem:[%s260 + $0x80] sm:$0xff]
        %v342 = vld [vmem:[%s260 + $0x88] sm:$0xff]
        %v343 = vld [vmem:[%s260 + $0x90] sm:$0xff]
        %v344 = vld [vmem:[%s260 + $0x98] sm:$0xff]
        %v345 = vld [vmem:[%s260 + $0xa0] sm:$0xff]
        %v346 = vld [vmem:[%s260 + $0xa8] sm:$0xff]
        %v347 = vld [vmem:[%s260 + $0xb0] sm:$0xff]
        %v348 = vld [vmem:[%s260 + $0xb8] sm:$0xff]
        %v349 = vld [vmem:[%s260 + $0xc0] sm:$0xff]
        %v350 = vld [vmem:[%s260 + $0xc8] sm:$0xff]
        %v351 = vld [vmem:[%s260 + $0xd0] sm:$0xff]
        %v352 = vld [vmem:[%s260 + $0xd8] sm:$0xff]
        %v353 = vld [vmem:[%s260 + $0xe0] sm:$0xff]
        %v354 = vld [vmem:[%s260 + $0xe8] sm:$0xff]
        %v355 = vld [vmem:[%s260 + $0xf0] sm:$0xff]
        %v356 = vld [vmem:[%s260 + $0xf8] sm:$0xff]
        %v357 = vld [vmem:[%s260 + $0x100] sm:$0xff]
        %v358 = vld [vmem:[%s260 + $0x108] sm:$0xff]
        %v359 = vld [vmem:[%s260 + $0x110] sm:$0xff]
        %v360 = vld [vmem:[%s260 + $0x118] sm:$0xff]
        %v361 = vld [vmem:[%s260 + $0x120] sm:$0xff]
        %v362 = vld [vmem:[%s260 + $0x128] sm:$0xff]
        %v363 = vld [vmem:[%s260 + $0x130] sm:$0xff]
        %v364 = vld [vmem:[%s260 + $0x138] sm:$0xff]
        %v365 = vld [vmem:[%s260 + $0x140] sm:$0xff]
        %v366 = vld [vmem:[%s260 + $0x148] sm:$0xff]
        %v367 = vld [vmem:[%s260 + $0x150] sm:$0xff]
        %v368 = vld [vmem:[%s260 + $0x158] sm:$0xff]
        %v369 = vld [vmem:[%s260 + $0x160] sm:$0xff]
        %v370 = vld [vmem:[%s260 + $0x168] sm:$0xff]
        %v371 = vld [vmem:[%s260 + $0x170] sm:$0xff]
        %v372 = vld [vmem:[%s260 + $0x178] sm:$0xff]
        %v373 = vld [vmem:[%s260 + $0x180] sm:$0xff]
        %v374 = vld [vmem:[%s260 + $0x188] sm:$0xff]
        %v375 = vld [vmem:[%s260 + $0x190] sm:$0xff]
        %v376 = vld [vmem:[%s260 + $0x198] sm:$0xff]
        %v377 = vld [vmem:[%s260 + $0x1a0] sm:$0xff]
        %v378 = vld [vmem:[%s260 + $0x1a8] sm:$0xff]
        %v379 = vld [vmem:[%s260 + $0x1b0] sm:$0xff]
        %v380 = vld [vmem:[%s260 + $0x1b8] sm:$0xff]
        %v381 = vld [vmem:[%s260 + $0x1c0] sm:$0xff]
        %v382 = vld [vmem:[%s260 + $0x1c8] sm:$0xff]
        %v383 = vld [vmem:[%s260 + $0x1d0] sm:$0xff]
        %v384 = vld [vmem:[%s260 + $0x1d8] sm:$0xff]
        %v385 = vld [vmem:[%s260 + $0x1e0] sm:$0xff]
        %v386 = vld [vmem:[%s260 + $0x1e8] sm:$0xff]
        %v387 = vld [vmem:[%s260 + $0x1f0] sm:$0xff]
        %v388 = vld [vmem:[%s260 + $0x1f8] sm:$0xff]
        %v389 = vld [vmem:[%s260 + $0x200] sm:$0xff]
        %v390 = vld [vmem:[%s260 + $0x208] sm:$0xff]
        %v391 = vld [vmem:[%s260 + $0x210] sm:$0xff]
        %v392 = vld [vmem:[%s260 + $0x218] sm:$0xff]
        %v393 = vld [vmem:[%s260 + $0x220] sm:$0xff]
        %v394 = vld [vmem:[%s260 + $0x228] sm:$0xff]
        %v395 = vld [vmem:[%s260 + $0x230] sm:$0xff]
        %v396 = vld [vmem:[%s260 + $0x238] sm:$0xff]
        %v397 = vld [vmem:[%s260 + $0x240] sm:$0xff]
        %v398 = vld [vmem:[%s260 + $0x248] sm:$0xff]
        %v399 = vld [vmem:[%s260 + $0x250] sm:$0xff]
        %v400 = vld [vmem:[%s260 + $0x258] sm:$0xff]
        %v401 = vld [vmem:[%s260 + $0x260] sm:$0xff]
        %v402 = vld [vmem:[%s260 + $0x268] sm:$0xff]
        %v403 = vld [vmem:[%s260 + $0x270] sm:$0xff]
        %v404 = vld [vmem:[%s260 + $0x278] sm:$0xff]
        %v405 = vld [vmem:[%s260 + $0x280] sm:$0xff]
        %v406 = vld [vmem:[%s260 + $0x288] sm:$0xff]
        %v407 = vld [vmem:[%s260 + $0x290] sm:$0xff]
        %v408 = vld [vmem:[%s260 + $0x298] sm:$0xff]
        %v409 = vld [vmem:[%s260 + $0x2a0] sm:$0xff]
        %v410 = vld [vmem:[%s260 + $0x2a8] sm:$0xff]
        %v411 = vld [vmem:[%s260 + $0x2b0] sm:$0xff]
        %v412 = vld [vmem:[%s260 + $0x2b8] sm:$0xff]
        %v413 = vld [vmem:[%s260 + $0x2c0] sm:$0xff]
        %v414 = vld [vmem:[%s260 + $0x2c8] sm:$0xff]
        %v415 = vld [vmem:[%s260 + $0x2d0] sm:$0xff]
        %v416 = vld [vmem:[%s260 + $0x2d8] sm:$0xff]
        %v417 = vld [vmem:[%s260 + $0x2e0] sm:$0xff]
        %v418 = vld [vmem:[%s260 + $0x2e8] sm:$0xff]
        %v419 = vld [vmem:[%s260 + $0x2f0] sm:$0xff]
        %v420 = vld [vmem:[%s260 + $0x2f8] sm:$0xff]
        %v421 = vld [vmem:[%s260 + $0x300] sm:$0xff]
        %v422 = vld [vmem:[%s260 + $0x308] sm:$0xff]
        %v423 = vld [vmem:[%s260 + $0x310] sm:$0xff]
        %v424 = vld [vmem:[%s260 + $0x318] sm:$0xff]
        %v425 = vld [vmem:[%s260 + $0x320] sm:$0xff]
        %v426 = vld [vmem:[%s260 + $0x328] sm:$0xff]
        %v427 = vld [vmem:[%s260 + $0x330] sm:$0xff]
        %v428 = vld [vmem:[%s260 + $0x338] sm:$0xff]
        %v429 = vld [vmem:[%s260 + $0x340] sm:$0xff]
        %v430 = vld [vmem:[%s260 + $0x348] sm:$0xff]
        %v431 = vld [vmem:[%s260 + $0x350] sm:$0xff]
        %v432 = vld [vmem:[%s260 + $0x358] sm:$0xff]
        %v433 = vld [vmem:[%s260 + $0x360] sm:$0xff]
        %v434 = vld [vmem:[%s260 + $0x368] sm:$0xff]
        %v435 = vld [vmem:[%s260 + $0x370] sm:$0xff]
        %v436 = vld [vmem:[%s260 + $0x378] sm:$0xff]
        %v437 = vld [vmem:[%s260 + $0x380] sm:$0xff]
        %v438 = vld [vmem:[%s260 + $0x388] sm:$0xff]
        %v439 = vld [vmem:[%s260 + $0x390] sm:$0xff]
        %v440 = vld [vmem:[%s260 + $0x398] sm:$0xff]
        %v441 = vld [vmem:[%s260 + $0x3a0] sm:$0xff]
        %v442 = vld [vmem:[%s260 + $0x3a8] sm:$0xff]
        %v443 = vld [vmem:[%s260 + $0x3b0] sm:$0xff]
        %v444 = vld [vmem:[%s260 + $0x3b8] sm:$0xff]
        %v445 = vld [vmem:[%s260 + $0x3c0] sm:$0xff]
        %v446 = vld [vmem:[%s260 + $0x3c8] sm:$0xff]
        %v447 = vld [vmem:[%s260 + $0x3d0] sm:$0xff]
        %v448 = vld [vmem:[%s260 + $0x3d8] sm:$0xff]
        %v449 = vld [vmem:[%s260 + $0x3e0] sm:$0xff]
        %v450 = vld [vmem:[%s260 + $0x3e8] sm:$0xff]
        %v451 = vld [vmem:[%s260 + $0x3f0] sm:$0xff]
        %v452 = vld [vmem:[%s260 + $0x3f8] sm:$0xff]
        %453 = vmatprep.subr.mxu0 %v326
        %454 = vmatpush1.msra.mxu0 %v325
        %455 = vmatprep.subr.mxu0 %v330
        %456 = vmatpush1.msra.mxu0 %v329
        %457 = vmatprep.subr.mxu0 %v334
        %458 = vmatpush1.msra.mxu0 %v333
        %459 = vmatprep.subr.mxu0 %v338
        %460 = vmatpush1.msra.mxu0 %v337
        %461 = vmatprep.subr.mxu0 %v342
        %462 = vmatpush1.msra.mxu0 %v341
        %463 = vmatprep.subr.mxu0 %v346
        %464 = vmatpush1.msra.mxu0 %v345
        %465 = vmatprep.subr.mxu0 %v350
        %466 = vmatpush1.msra.mxu0 %v349
        %467 = vmatprep.subr.mxu0 %v354
        %468 = vmatpush1.msra.mxu0 %v353
        %469 = vmatprep.subr.mxu0 %v358
        %470 = vmatpush1.msra.mxu0 %v357
        %471 = vmatprep.subr.mxu0 %v362
        %472 = vmatpush1.msra.mxu0 %v361
        %473 = vmatprep.subr.mxu0 %v366
        %474 = vmatpush1.msra.mxu0 %v365
        %475 = vmatprep.subr.mxu0 %v370
        %476 = vmatpush1.msra.mxu0 %v369
        %477 = vmatprep.subr.mxu0 %v374
        %478 = vmatpush1.msra.mxu0 %v373
        %479 = vmatprep.subr.mxu0 %v378
        %480 = vmatpush1.msra.mxu0 %v377
        %481 = vmatprep.subr.mxu0 %v382
        %482 = vmatpush1.msra.mxu0 %v381
        %483 = vmatprep.subr.mxu0 %v386
        %484 = vmatpush1.msra.mxu0 %v385
        %485 = vmatprep.subr.mxu0 %v390
        %486 = vmatpush1.msra.mxu0 %v389
        %487 = vmatprep.subr.mxu0 %v394
        %488 = vmatpush1.msra.mxu0 %v393
        %489 = vmatprep.subr.mxu0 %v398
        %490 = vmatpush1.msra.mxu0 %v397
        %491 = vmatprep.subr.mxu0 %v402
        %492 = vmatpush1.msra.mxu0 %v401
        %493 = vmatprep.subr.mxu0 %v406
        %494 = vmatpush1.msra.mxu0 %v405
        %495 = vmatprep.subr.mxu0 %v410
        %496 = vmatpush1.msra.mxu0 %v409
        %497 = vmatprep.subr.mxu0 %v414
        %498 = vmatpush1.msra.mxu0 %v413
        %499 = vmatprep.subr.mxu0 %v418
        %500 = vmatpush1.msra.mxu0 %v417
        %501 = vmatprep.subr.mxu0 %v422
        %502 = vmatpush1.msra.mxu0 %v421
        %503 = vmatprep.subr.mxu0 %v426
        %504 = vmatpush1.msra.mxu0 %v425
        %505 = vmatprep.subr.mxu0 %v430
        %506 = vmatpush1.msra.mxu0 %v429
        %507 = vmatprep.subr.mxu0 %v434
        %508 = vmatpush1.msra.mxu0 %v433
        %509 = vmatprep.subr.mxu0 %v438
        %510 = vmatpush1.msra.mxu0 %v437
        %511 = vmatprep.subr.mxu0 %v442
        %512 = vmatpush1.msra.mxu0 %v441
        %513 = vmatprep.subr.mxu0 %v446
        %514 = vmatpush1.msra.mxu0 %v445
        %515 = vmatprep.subr.mxu0 %v450
        %516 = vmatpush1.msra.mxu0 %v449
        %517 = vmatprep.mubr.f32.mxu0 %v324
        %518 = vmatmul.mubr.f32.gmra.mrb[0].mxu0 %v323
        %v519 = vpop.f32.mrb[0].mxu0
        %v520 = vadd.f32 0.0, %v519
        %v521 = vpop.f32.mrb[0].mxu0
        %v522 = vadd.f32 0.0, %v521
        %523 = vdwg.mxu0
        %524 = vmatprep.subr.mxu0 %v328
        %525 = vmatpush1.msra.mxu0 %v327
        %526 = vmatprep.subr.mxu0 %v332
        %527 = vmatpush1.msra.mxu0 %v331
        %528 = vmatprep.subr.mxu0 %v336
        %529 = vmatpush1.msra.mxu0 %v335
        %530 = vmatprep.subr.mxu0 %v340
        %531 = vmatpush1.msra.mxu0 %v339
        %532 = vmatprep.subr.mxu0 %v344
        %533 = vmatpush1.msra.mxu0 %v343
        %534 = vmatprep.subr.mxu0 %v348
        %535 = vmatpush1.msra.mxu0 %v347
        %536 = vmatprep.subr.mxu0 %v352
        %537 = vmatpush1.msra.mxu0 %v351
        %538 = vmatprep.subr.mxu0 %v356
        %539 = vmatpush1.msra.mxu0 %v355
        %540 = vmatprep.subr.mxu0 %v360
        %541 = vmatpush1.msra.mxu0 %v359
        %542 = vmatprep.subr.mxu0 %v364
        %543 = vmatpush1.msra.mxu0 %v363
        %544 = vmatprep.subr.mxu0 %v368
        %545 = vmatpush1.msra.mxu0 %v367
        %546 = vmatprep.subr.mxu0 %v372
        %547 = vmatpush1.msra.mxu0 %v371
        %548 = vmatprep.subr.mxu0 %v376
        %549 = vmatpush1.msra.mxu0 %v375
        %550 = vmatprep.subr.mxu0 %v380
        %551 = vmatpush1.msra.mxu0 %v379
        %552 = vmatprep.subr.mxu0 %v384
        %553 = vmatpush1.msra.mxu0 %v383
        %554 = vmatprep.subr.mxu0 %v388
        %555 = vmatpush1.msra.mxu0 %v387
        %556 = vmatprep.subr.mxu0 %v392
        %557 = vmatpush1.msra.mxu0 %v391
        %558 = vmatprep.subr.mxu0 %v396
        %559 = vmatpush1.msra.mxu0 %v395
        %560 = vmatprep.subr.mxu0 %v400
        %561 = vmatpush1.msra.mxu0 %v399
        %562 = vmatprep.subr.mxu0 %v404
        %563 = vmatpush1.msra.mxu0 %v403
        %564 = vmatprep.subr.mxu0 %v408
        %565 = vmatpush1.msra.mxu0 %v407
        %566 = vmatprep.subr.mxu0 %v412
        %567 = vmatpush1.msra.mxu0 %v411
        %568 = vmatprep.subr.mxu0 %v416
        %569 = vmatpush1.msra.mxu0 %v415
        %570 = vmatprep.subr.mxu0 %v420
        %571 = vmatpush1.msra.mxu0 %v419
        %572 = vmatprep.subr.mxu0 %v424
        %573 = vmatpush1.msra.mxu0 %v423
        %574 = vmatprep.subr.mxu0 %v428
        %575 = vmatpush1.msra.mxu0 %v427
        %576 = vmatprep.subr.mxu0 %v432
        %577 = vmatpush1.msra.mxu0 %v431
        %578 = vmatprep.subr.mxu0 %v436
        %579 = vmatpush1.msra.mxu0 %v435
        %580 = vmatprep.subr.mxu0 %v440
        %581 = vmatpush1.msra.mxu0 %v439
        %582 = vmatprep.subr.mxu0 %v444
        %583 = vmatpush1.msra.mxu0 %v443
        %584 = vmatprep.subr.mxu0 %v448
        %585 = vmatpush1.msra.mxu0 %v447
        %586 = vmatprep.subr.mxu0 %v452
        %587 = vmatpush1.msra.mxu0 %v451
        %588 = vmatprep.mubr.f32.mxu0 %v324
        %589 = vmatmul.mubr.f32.gmra.mrb[0].mxu0 %v323
        %v590 = vpop.f32.mrb[0].mxu0
        %v591 = vadd.f32 0.0, %v590
        %v592 = vpop.f32.mrb[0].mxu0
        %v593 = vadd.f32 0.0, %v592
        %594 = vdwg.mxu0
        %v595 = vxor.u32 %v520, 2147483648
        %v596 = vxor.u32 %v522, 2147483648
        %v597 = vmul.f32 %v595, 1.442695
        %v598 = vpow.pop %v597
        %v599 = vmul.f32 %v596, 1.442695
        %v600 = vpow.pop %v599
        %v601 = vadd.f32 %v598, 1.0
        %v602 = vadd.f32 %v600, 1.0
        %v603 = vrcp.pop %v601
        %v604 = vmul.f32 1.0, %v603
        %v605 = vrcp.pop %v602
        %v606 = vmul.f32 1.0, %v605
        %v607 = vmul.f32 %v520, %v604
        %v608 = vmul.f32 %v522, %v606
        %v609 = vmul.f32 %v607, %v591
        %v610 = vmul.f32 %v608, %v593
        %v611 = vld [vmem:[#allocation2] sm:$0xff]
        %v612 = vld [vmem:[#allocation2 + $0x8] sm:$0xff]
        %v613 = vld [vmem:[%s269] sm:$0xff]
        %v614 = vld [vmem:[%s269 + $0x8] sm:$0xff]
        %v615 = vld [vmem:[%s269 + $0x10] sm:$0xff]
        %v616 = vld [vmem:[%s269 + $0x18] sm:$0xff]
        %v617 = vld [vmem:[%s269 + $0x20] sm:$0xff]
        %v618 = vld [vmem:[%s269 + $0x28] sm:$0xff]
        %v619 = vld [vmem:[%s269 + $0x30] sm:$0xff]
        %v620 = vld [vmem:[%s269 + $0x38] sm:$0xff]
        %v621 = vld [vmem:[%s269 + $0x40] sm:$0xff]
        %v622 = vld [vmem:[%s269 + $0x48] sm:$0xff]
        %v623 = vld [vmem:[%s269 + $0x50] sm:$0xff]
        %v624 = vld [vmem:[%s269 + $0x58] sm:$0xff]
        %v625 = vld [vmem:[%s269 + $0x60] sm:$0xff]
        %v626 = vld [vmem:[%s269 + $0x68] sm:$0xff]
        %v627 = vld [vmem:[%s269 + $0x70] sm:$0xff]
        %v628 = vld [vmem:[%s269 + $0x78] sm:$0xff]
        %v629 = vld [vmem:[%s269 + $0x80] sm:$0xff]
        %v630 = vld [vmem:[%s269 + $0x88] sm:$0xff]
        %v631 = vld [vmem:[%s269 + $0x90] sm:$0xff]
        %v632 = vld [vmem:[%s269 + $0x98] sm:$0xff]
        %v633 = vld [vmem:[%s269 + $0xa0] sm:$0xff]
        %v634 = vld [vmem:[%s269 + $0xa8] sm:$0xff]
        %v635 = vld [vmem:[%s269 + $0xb0] sm:$0xff]
        %v636 = vld [vmem:[%s269 + $0xb8] sm:$0xff]
        %v637 = vld [vmem:[%s269 + $0xc0] sm:$0xff]
        %v638 = vld [vmem:[%s269 + $0xc8] sm:$0xff]
        %v639 = vld [vmem:[%s269 + $0xd0] sm:$0xff]
        %v640 = vld [vmem:[%s269 + $0xd8] sm:$0xff]
        %v641 = vld [vmem:[%s269 + $0xe0] sm:$0xff]
        %v642 = vld [vmem:[%s269 + $0xe8] sm:$0xff]
        %v643 = vld [vmem:[%s269 + $0xf0] sm:$0xff]
        %v644 = vld [vmem:[%s269 + $0xf8] sm:$0xff]
        %v645 = vld [vmem:[%s269 + $0x100] sm:$0xff]
        %v646 = vld [vmem:[%s269 + $0x108] sm:$0xff]
        %v647 = vld [vmem:[%s269 + $0x110] sm:$0xff]
        %v648 = vld [vmem:[%s269 + $0x118] sm:$0xff]
        %v649 = vld [vmem:[%s269 + $0x120] sm:$0xff]
        %v650 = vld [vmem:[%s269 + $0x128] sm:$0xff]
        %v651 = vld [vmem:[%s269 + $0x130] sm:$0xff]
        %v652 = vld [vmem:[%s269 + $0x138] sm:$0xff]
        %v653 = vld [vmem:[%s269 + $0x140] sm:$0xff]
        %v654 = vld [vmem:[%s269 + $0x148] sm:$0xff]
        %v655 = vld [vmem:[%s269 + $0x150] sm:$0xff]
        %v656 = vld [vmem:[%s269 + $0x158] sm:$0xff]
        %v657 = vld [vmem:[%s269 + $0x160] sm:$0xff]
        %v658 = vld [vmem:[%s269 + $0x168] sm:$0xff]
        %v659 = vld [vmem:[%s269 + $0x170] sm:$0xff]
        %v660 = vld [vmem:[%s269 + $0x178] sm:$0xff]
        %v661 = vld [vmem:[%s269 + $0x180] sm:$0xff]
        %v662 = vld [vmem:[%s269 + $0x188] sm:$0xff]
        %v663 = vld [vmem:[%s269 + $0x190] sm:$0xff]
        %v664 = vld [vmem:[%s269 + $0x198] sm:$0xff]
        %v665 = vld [vmem:[%s269 + $0x1a0] sm:$0xff]
        %v666 = vld [vmem:[%s269 + $0x1a8] sm:$0xff]
        %v667 = vld [vmem:[%s269 + $0x1b0] sm:$0xff]
        %v668 = vld [vmem:[%s269 + $0x1b8] sm:$0xff]
        %v669 = vld [vmem:[%s269 + $0x1c0] sm:$0xff]
        %v670 = vld [vmem:[%s269 + $0x1c8] sm:$0xff]
        %v671 = vld [vmem:[%s269 + $0x1d0] sm:$0xff]
        %v672 = vld [vmem:[%s269 + $0x1d8] sm:$0xff]
        %v673 = vld [vmem:[%s269 + $0x1e0] sm:$0xff]
        %v674 = vld [vmem:[%s269 + $0x1e8] sm:$0xff]
        %v675 = vld [vmem:[%s269 + $0x1f0] sm:$0xff]
        %v676 = vld [vmem:[%s269 + $0x1f8] sm:$0xff]
        %677 = vmatprep.subr.mxu0 %v614
        %678 = vmatpush1.msra.mxu0 %v613
        %679 = vmatprep.subr.mxu0 %v616
        %680 = vmatpush1.msra.mxu0 %v615
        %681 = vmatprep.subr.mxu0 %v618
        %682 = vmatpush1.msra.mxu0 %v617
        %683 = vmatprep.subr.mxu0 %v620
        %684 = vmatpush1.msra.mxu0 %v619
        %685 = vmatprep.subr.mxu0 %v622
        %686 = vmatpush1.msra.mxu0 %v621
        %687 = vmatprep.subr.mxu0 %v624
        %688 = vmatpush1.msra.mxu0 %v623
        %689 = vmatprep.subr.mxu0 %v626
        %690 = vmatpush1.msra.mxu0 %v625
        %691 = vmatprep.subr.mxu0 %v628
        %692 = vmatpush1.msra.mxu0 %v627
        %693 = vmatprep.subr.mxu0 %v630
        %694 = vmatpush1.msra.mxu0 %v629
        %695 = vmatprep.subr.mxu0 %v632
        %696 = vmatpush1.msra.mxu0 %v631
        %697 = vmatprep.subr.mxu0 %v634
        %698 = vmatpush1.msra.mxu0 %v633
        %699 = vmatprep.subr.mxu0 %v636
        %700 = vmatpush1.msra.mxu0 %v635
        %701 = vmatprep.subr.mxu0 %v638
        %702 = vmatpush1.msra.mxu0 %v637
        %703 = vmatprep.subr.mxu0 %v640
        %704 = vmatpush1.msra.mxu0 %v639
        %705 = vmatprep.subr.mxu0 %v642
        %706 = vmatpush1.msra.mxu0 %v641
        %707 = vmatprep.subr.mxu0 %v644
        %708 = vmatpush1.msra.mxu0 %v643
        %709 = vmatprep.subr.mxu0 %v646
        %710 = vmatpush1.msra.mxu0 %v645
        %711 = vmatprep.subr.mxu0 %v648
        %712 = vmatpush1.msra.mxu0 %v647
        %713 = vmatprep.subr.mxu0 %v650
        %714 = vmatpush1.msra.mxu0 %v649
        %715 = vmatprep.subr.mxu0 %v652
        %716 = vmatpush1.msra.mxu0 %v651
        %717 = vmatprep.subr.mxu0 %v654
        %718 = vmatpush1.msra.mxu0 %v653
        %719 = vmatprep.subr.mxu0 %v656
        %720 = vmatpush1.msra.mxu0 %v655
        %721 = vmatprep.subr.mxu0 %v658
        %722 = vmatpush1.msra.mxu0 %v657
        %723 = vmatprep.subr.mxu0 %v660
        %724 = vmatpush1.msra.mxu0 %v659
        %725 = vmatprep.subr.mxu0 %v662
        %726 = vmatpush1.msra.mxu0 %v661
        %727 = vmatprep.subr.mxu0 %v664
        %728 = vmatpush1.msra.mxu0 %v663
        %729 = vmatprep.subr.mxu0 %v666
        %730 = vmatpush1.msra.mxu0 %v665
        %731 = vmatprep.subr.mxu0 %v668
        %732 = vmatpush1.msra.mxu0 %v667
        %733 = vmatprep.subr.mxu0 %v670
        %734 = vmatpush1.msra.mxu0 %v669
        %735 = vmatprep.subr.mxu0 %v672
        %736 = vmatpush1.msra.mxu0 %v671
        %737 = vmatprep.subr.mxu0 %v674
        %738 = vmatpush1.msra.mxu0 %v673
        %739 = vmatprep.subr.mxu0 %v676
        %740 = vmatpush1.msra.mxu0 %v675
        %741 = vmatprep.mubr.f32.mxu0 %v610
        %742 = vmatmul.mubr.f32.gmra.mrb[0].mxu0 %v609
        %v743 = vpop.f32.mrb[0].mxu0
        %v744 = vadd.f32 0.0, %v743
        %v745 = vpop.f32.mrb[0].mxu0
        %v746 = vadd.f32 0.0, %v745
        %747 = vdwg.mxu0
        %v748 = vadd.f32 %v611, %v744
        %v749 = vadd.f32 %v612, %v746
        %750 = vst [vmem:[#allocation2] sm:$0xff] %v748
        %751 = vst [vmem:[#allocation2 + $0x8] sm:$0xff] %v749
        %p752 = scmp.eq.s32.totalorder %s29, 1
        // Predicated region
        $region53: #{tpu_custom_call.1} parent=35 // pred_check
          %p753 = pneg %p752
        $region54: #{tpu_custom_call.1} parent=35 // pred_check_branch
          %755 = sbr.rel (%p753) target = $region56
        $region55: #{tpu_custom_call.1} parent=35 // pred_region
          %v756 = vld [vmem:[#allocation2] sm:$0xff]
          %v757 = vld [vmem:[#allocation2 + $0x8] sm:$0xff]
          %758 = vst [vmem:[%s303] sm:$0xff] %v756
          %759 = vst [vmem:[%s303 + $0x8] sm:$0xff] %v757
        $region56: #{tpu_custom_call.1} parent=35 // pred_fallthru
          _
        %s760 = sand.u32 %s143, 1
        %s761 = scalar_lea.sflag [#allocation5], %s760
        %s762 = sand.u32 %s143, 1
        %s763 = smul.addr %s762, 16
        %s764 = scalar_lea.vmem [#allocation9], %s763
        // Predicated region
        $region57: #{tpu_custom_call.1} parent=35 // pred_check
          %p765 = pneg %p153
        $region58: #{tpu_custom_call.1} parent=35 // pred_check_branch
          %767 = sbr.rel (%p765) target = $region60
        $region59: #{tpu_custom_call.1} parent=35 // pred_region
          %s769 = ssub.s32 256, 256
          %770 = vsyncadd %s761, %s769
          %s771 = smul.addr %s28, 2
          %s772 = smul.addr %s771, 128
          %s773 = scalar_lea.hbm %s4, %s772
          %s775 = sshll.u32 %s764, 4
          %s776 = int_to_ptr.vmem [resolvable:$true] %s775
          %778 = dma.vmem_to_hbm [thread:$0]  %s776, 256, %s773, %s761
        $region60: #{tpu_custom_call.1} parent=35 // pred_fallthru
          _
      $region36: #{tpu_custom_call.1} parent=5 // pred_fallthru
        _
      %p779 = scmp.le.s32.totalorder 2, %s19
      // Predicated region
      $region61: #{tpu_custom_call.1} parent=5 // pred_check
        %p780 = pneg %p779
      $region62: #{tpu_custom_call.1} parent=5 // pred_check_branch
        %782 = sbr.rel (%p780) target = $region64
      $region63: #{tpu_custom_call.1} parent=5 // pred_region
        %s783 = ssub.s32 %s19, 2
        // Predicated region
        $region65: #{tpu_custom_call.1} parent=63 // pred_check
          %p784 = pneg %p159
        $region66: #{tpu_custom_call.1} parent=63 // pred_check_branch
          %786 = sbr.rel (%p784) target = $region68
        $region67: #{tpu_custom_call.1} parent=63 // pred_region
          %s787 = sand.u32 %s144, 1
          %s788 = scalar_lea.sflag [#allocation5], %s787
          %s789 = sand.u32 %s144, 1
          %s790 = smul.addr %s789, 16
          %s791 = scalar_lea.vmem [#allocation9], %s790
          %792 = dma.done %s788, 256
        $region68: #{tpu_custom_call.1} parent=63 // pred_fallthru
          _
      $region64: #{tpu_custom_call.1} parent=5 // pred_fallthru
        _
    $region6: #{tpu_custom_call.1} parent=1 // loop_footer
      %s23 = sadd.s32 1, %s19
    $region7: #{tpu_custom_call.1} parent=1 // loop_footer_branch
      %18 = sbr.rel target = $region3
    $region8: #{tpu_custom_call.1} parent=1 // loop_exit
      _
    %793 = vsyncpa [#allocation4], 1
    %s794 = scalar_lea.sflag [#allocation4], 1
    %795 = vsyncpa %s794, 1
    %796 = vsyncpa [#allocation7], 1
    %s797 = scalar_lea.sflag [#allocation7], 1
    %798 = vsyncpa %s797, 1
    %799 = vsyncpa [#allocation5], 1
    %s800 = scalar_lea.sflag [#allocation5], 1
    %801 = vsyncpa %s800, 1

</llo_original>
